<compile_context>
chip_gen: v7x
topology: tpu7x:2x2x1
jax: 0.10.0
libtpu: 0.0.40
codegen_flags: <defaults>
</compile_context>

<pallas_src>
import functools

import jax
import jax.numpy as jnp
from jax.experimental import pallas as pl
from jax.experimental.pallas import tpu as pltpu

LANE = 128  # lane-dense padded width for the fused head output / kernel output


def _round_up(x, m):
    return ((x + m - 1) // m) * m


def dueling_kernel(x_ref,
                   w1_ref, b1_ref,        # shared layer 1
                   w2_ref, b2_ref,        # shared layer 2
                   ws_ref, bs_ref,        # shared output layer (+ forward ReLU)
                   wh1_ref, bh1_ref,      # fused pi/v hidden:  (S, 2S)
                   wh2_ref, bh2_ref,      # fused dueling head: (2S, 128), combine pre-folded
                   out_ref):
    # bf16 into the MXU, f32 accumulation, f32 element-wise (bias add / ReLU).
    x = x_ref[...].astype(jnp.bfloat16)    # in-kernel cast of the f32 input tile
    h = jnp.maximum(
        jnp.dot(x, w1_ref[...], preferred_element_type=jnp.float32) + b1_ref[...], 0.0)
    h = jnp.maximum(
        jnp.dot(h.astype(jnp.bfloat16), w2_ref[...],
                preferred_element_type=jnp.float32) + b2_ref[...], 0.0)
    # shared output linear, then the F.relu applied in DuelingNet.forward
    t = jnp.maximum(
        jnp.dot(h.astype(jnp.bfloat16), ws_ref[...],
                preferred_element_type=jnp.float32) + bs_ref[...], 0.0)
    # fused pi/v hidden layer: [ah | vh] = ReLU(t @ [wp1 | wv1] + [bp1 | bv1])
    hh = jnp.maximum(
        jnp.dot(t.astype(jnp.bfloat16), wh1_ref[...],
                preferred_element_type=jnp.float32) + bh1_ref[...], 0.0)
    # fused, lane-padded head with the dueling combine folded into the weights:
    #   y[:, j] = v + adv_j - mean(adv)   for j < n_action;  y[:, j>=A] = 0
    y = jnp.dot(hh.astype(jnp.bfloat16), wh2_ref[...],
                preferred_element_type=jnp.float32) + bh2_ref[...]
    out_ref[...] = y.astype(out_ref.dtype)   # bare lane-dense store, no epilogue


def prepare_weights(params, n_action):
    """One-time fuse/cast of the parameters (hoist out of the per-call path)."""
    S = params["wp1"].shape[0]
    A = n_action
    f32, bf16 = jnp.float32, jnp.bfloat16

    # --- fold the dueling combine into the head output layer (in f32, before bf16) ----
    wp2 = params["wp2"].astype(f32)                       # (S, A)
    bp2 = params["bp2"].astype(f32)                       # (1, A)
    wv2 = params["wv2"].astype(f32)                       # (S, 1)
    bv2 = params["bv2"].astype(f32)                       # (1, 1)
    w_adv = wp2 - jnp.mean(wp2, axis=1, keepdims=True)    # adv - mean(adv) weight part
    b_adv = bp2 - jnp.mean(bp2, axis=1, keepdims=True)    # adv - mean(adv) bias part

    wh1 = jnp.concatenate([params["wp1"], params["wv1"]], axis=1)   # (S, 2S)
    bh1 = jnp.concatenate([params["bp1"], params["bv1"]], axis=1)   # (1, 2S)

    wh2 = jnp.zeros((2 * S, LANE), f32)
    wh2 = wh2.at[:S, :A].set(w_adv)                                 # adv-mean columns
    wh2 = wh2.at[S:, :A].set(jnp.broadcast_to(wv2, (S, A)))         # +v on every column
    bh2 = jnp.zeros((1, LANE), f32)                                 # bias stays f32
    bh2 = bh2.at[0, :A].set(b_adv[0] + bv2[0, 0])

    weights = (params["w1"].astype(bf16), params["b1"].astype(f32),
               params["w2"].astype(bf16), params["b2"].astype(f32),
               params["ws"].astype(bf16), params["bs"].astype(f32),
               wh1.astype(bf16), bh1.astype(f32),
               wh2.astype(bf16), bh2)
    return weights


def _choose_batch_tile(B, batch_tile):
    # >= 2 grid steps when B is large (v7x megacore), tile a multiple of 16 (bf16
    # sublane quantum), never larger than needed for the actual batch.
    tb = min(batch_tile, _round_up(B, 16))
    tb = min(tb, max(16, _round_up(pl.cdiv(B, 2), 16)))
    if tb > B:                       # tiny-batch path: fall back to the f32 sublane quantum
        tb = _round_up(B, 8)
    return tb


def dueling_net(x, weights, *, n_action, batch_tile=2048,
                out_dtype=jnp.bfloat16, return_padded=False):
    """x: (B, encoded_dim) f32.  weights: tuple from prepare_weights()."""
    B, E = x.shape
    (w1, b1, w2, b2, ws, bs, wh1, bh1, wh2, bh2) = weights
    H1, H2, S = w1.shape[1], w2.shape[1], ws.shape[1]
    assert n_action <= LANE

    TB = _choose_batch_tile(B, batch_tile)
    grid = (pl.cdiv(B, TB),)                 # ragged last block handled by Pallas masking

    def const_spec(a):  # weight stays resident in VMEM: same block every grid step
        return pl.BlockSpec(a.shape, lambda i: (0,) * a.ndim)

    out_itemsize = jnp.dtype(out_dtype).itemsize
    weight_bytes = sum(int(a.size) * a.dtype.itemsize for a in weights)
    flops = 2 * B * (E * H1 + H1 * H2 + H2 * S + S * 2 * S + 2 * S * LANE)
    bytes_accessed = B * E * 4 + B * LANE * out_itemsize + weight_bytes

    # Only raise the scoped VMEM limit if the double-buffered working set needs it
    # (matters on v5e's 16 MiB default when TB is pushed very high).
    vmem_need = 2 * (TB * E * 4 + TB * LANE * out_itemsize) + weight_bytes
    compiler_params = pltpu.CompilerParams(
        dimension_semantics=("parallel",),
        vmem_limit_bytes=(vmem_need + (8 << 20)) if vmem_need > (12 << 20) else None,
    )

    out = pl.pallas_call(
        dueling_kernel,
        out_shape=jax.ShapeDtypeStruct((B, LANE), out_dtype),
        grid_spec=pl.GridSpec(
            grid=grid,
            in_specs=[pl.BlockSpec((TB, E), lambda i: (i, 0))]
                     + [const_spec(a) for a in weights],
            out_specs=pl.BlockSpec((TB, LANE), lambda i: (i, 0)),
        ),
        compiler_params=compiler_params,
        cost_estimate=pl.CostEstimate(flops=flops, transcendentals=0,
                                      bytes_accessed=bytes_accessed),
    )(x, *weights)

    if return_padded:
        return out                 # (B, 128); columns [:n_action] are the Q-values
    return out[:, :n_action]


def init_params(key, encoded_dim, hidden_sizes, shared_dim, n_action):
    assert len(hidden_sizes) == 2, "kernel is specialized to 2 hidden layers"
    h1, h2 = hidden_sizes
    dims = [
        ("w1", (encoded_dim, h1)), ("b1", (1, h1)),
        ("w2", (h1, h2)),          ("b2", (1, h2)),
        ("ws", (h2, shared_dim)),  ("bs", (1, shared_dim)),
        ("wp1", (shared_dim, shared_dim)), ("bp1", (1, shared_dim)),
        ("wp2", (shared_dim, n_action)),   ("bp2", (1, n_action)),
        ("wv1", (shared_dim, shared_dim)), ("bv1", (1, shared_dim)),
        ("wv2", (shared_dim, 1)),          ("bv2", (1, 1)),
    ]
    keys = jax.random.split(key, len(dims))
    params = {}
    for (name, shape), k in zip(dims, keys):
        fan_in = shape[0] if name.startswith("w") else shape[1]
        scale = 1.0 / jnp.sqrt(jnp.float32(fan_in))
        params[name] = jax.random.uniform(k, shape, jnp.float32, -1.0, 1.0) * scale
    return params


def dueling_net_ref(x, p):
    """Pure-JAX reference with bf16-input / f32-accumulate numerics (un-fused heads)."""
    bf16, f32 = jnp.bfloat16, jnp.float32

    def lin(a, w, b):
        return jnp.dot(a.astype(bf16), w.astype(bf16), preferred_element_type=f32) + b

    h = jnp.maximum(lin(x, p["w1"], p["b1"]), 0.0)
    h = jnp.maximum(lin(h, p["w2"], p["b2"]), 0.0)
    t = jnp.maximum(lin(h, p["ws"], p["bs"]), 0.0)
    ah = jnp.maximum(lin(t, p["wp1"], p["bp1"]), 0.0)
    adv = lin(ah, p["wp2"], p["bp2"])
    vh = jnp.maximum(lin(t, p["wv1"], p["bv1"]), 0.0)
    v = lin(vh, p["wv2"], p["bv2"])
    return v + (adv - jnp.mean(adv, axis=1, keepdims=True))


if __name__ == "__main__":
    encoded_dim, hidden_sizes, shared_dim, n_action = 32, [64, 32], 32, 8
    batch = 8

    root = jax.random.PRNGKey(0)
    kx, kp = jax.random.split(root)
    x = jax.random.normal(kx, (batch, encoded_dim), jnp.float32)
    params = init_params(kp, encoded_dim, hidden_sizes, shared_dim, n_action)

    # One-time weight preparation (fuse heads, fold dueling combine, bf16 casts).
    weights = jax.tree_util.tree_map(jax.block_until_ready,
                                     prepare_weights(params, n_action))

    fwd = jax.jit(functools.partial(dueling_net, n_action=n_action))
    out = jax.block_until_ready(fwd(x, weights))
    ref = jax.block_until_ready(dueling_net_ref(x, params))

    assert out.shape == (batch, n_action)
    out_f32 = out.astype(jnp.float32)
    err = float(jnp.max(jnp.abs(out_f32 - ref)))
    assert jnp.allclose(out_f32, ref, atol=1e-2, rtol=1e-2), f"max abs err {err}"
    print("KERNEL_OK")
</pallas_src>

<mosaic_0001>
module attributes {stable_mosaic.version = 11 : i64} {
  func.func @dueling_kernel(%arg0: i32, %arg1: memref<8x32xf32, #tpu.memory_space<vmem>>, %arg2: memref<32x64xbf16, #tpu.memory_space<vmem>>, %arg3: memref<1x64xf32, #tpu.memory_space<vmem>>, %arg4: memref<64x32xbf16, #tpu.memory_space<vmem>>, %arg5: memref<1x32xf32, #tpu.memory_space<vmem>>, %arg6: memref<32x32xbf16, #tpu.memory_space<vmem>>, %arg7: memref<1x32xf32, #tpu.memory_space<vmem>>, %arg8: memref<32x64xbf16, #tpu.memory_space<vmem>>, %arg9: memref<1x64xf32, #tpu.memory_space<vmem>>, %arg10: memref<64x128xbf16, #tpu.memory_space<vmem>>, %arg11: memref<1x128xf32, #tpu.memory_space<vmem>>, %arg12: memref<8x128xbf16, #tpu.memory_space<vmem>>) attributes {dimension_semantics = [#tpu.dimension_semantics<parallel>], iteration_bounds = array<i64: 1>, scalar_prefetch = 0 : i64, scratch_operands = 0 : i64, tpu.core_type = #tpu.core_type<tc>, window_params = [{transform_indices = @transform_0, window_bounds = array<i64: 8, 32>}, {pipeline_mode = #tpu.pipeline_mode<synchronous>, transform_indices = @transform_1, window_bounds = array<i64: 32, 64>}, {pipeline_mode = #tpu.pipeline_mode<synchronous>, transform_indices = @transform_2, window_bounds = array<i64: 1, 64>}, {pipeline_mode = #tpu.pipeline_mode<synchronous>, transform_indices = @transform_3, window_bounds = array<i64: 64, 32>}, {pipeline_mode = #tpu.pipeline_mode<synchronous>, transform_indices = @transform_4, window_bounds = array<i64: 1, 32>}, {pipeline_mode = #tpu.pipeline_mode<synchronous>, transform_indices = @transform_5, window_bounds = array<i64: 32, 32>}, {pipeline_mode = #tpu.pipeline_mode<synchronous>, transform_indices = @transform_6, window_bounds = array<i64: 1, 32>}, {pipeline_mode = #tpu.pipeline_mode<synchronous>, transform_indices = @transform_7, window_bounds = array<i64: 32, 64>}, {pipeline_mode = #tpu.pipeline_mode<synchronous>, transform_indices = @transform_8, window_bounds = array<i64: 1, 64>}, {pipeline_mode = #tpu.pipeline_mode<synchronous>, transform_indices = @transform_9, window_bounds = array<i64: 64, 128>}, {pipeline_mode = #tpu.pipeline_mode<synchronous>, transform_indices = @transform_10, window_bounds = array<i64: 1, 128>}, {transform_indices = @transform_11, window_bounds = array<i64: 8, 128>}]} {
    %c0 = arith.constant 0 : index
    %c0_0 = arith.constant 0 : index
    %0 = vector.load %arg1[%c0, %c0_0] : memref<8x32xf32, #tpu.memory_space<vmem>>, vector<8x32xf32>
    %1 = arith.truncf %0 : vector<8x32xf32> to vector<8x32xbf16>
    %c0_1 = arith.constant 0 : index
    %c0_2 = arith.constant 0 : index
    %2 = vector.load %arg2[%c0_1, %c0_2] : memref<32x64xbf16, #tpu.memory_space<vmem>>, vector<32x64xbf16>
    %cst = arith.constant dense<0.000000e+00> : vector<8x64xf32>
    %3 = tpu.matmul %1, %2, %cst {dimension_numbers = #tpu.dot_dimension_numbers<[1], [0], [0], [1], [0, 0, 1, 1], [], []>} : vector<8x32xbf16>, vector<32x64xbf16>, vector<8x64xf32> -> vector<8x64xf32>
    %c0_3 = arith.constant 0 : index
    %c0_4 = arith.constant 0 : index
    %4 = vector.load %arg3[%c0_3, %c0_4] : memref<1x64xf32, #tpu.memory_space<vmem>>, vector<1x64xf32>
    %5 = vector.broadcast %4 : vector<1x64xf32> to vector<8x64xf32>
    %6 = arith.addf %3, %5 : vector<8x64xf32>
    %cst_5 = arith.constant 0.000000e+00 : f32
    %7 = vector.broadcast %cst_5 : f32 to vector<8x64xf32>
    %8 = arith.maximumf %6, %7 : vector<8x64xf32>
    %9 = arith.truncf %8 : vector<8x64xf32> to vector<8x64xbf16>
    %c0_6 = arith.constant 0 : index
    %c0_7 = arith.constant 0 : index
    %10 = vector.load %arg4[%c0_6, %c0_7] : memref<64x32xbf16, #tpu.memory_space<vmem>>, vector<64x32xbf16>
    %cst_8 = arith.constant dense<0.000000e+00> : vector<8x32xf32>
    %11 = tpu.matmul %9, %10, %cst_8 {dimension_numbers = #tpu.dot_dimension_numbers<[1], [0], [0], [1], [0, 0, 1, 1], [], []>} : vector<8x64xbf16>, vector<64x32xbf16>, vector<8x32xf32> -> vector<8x32xf32>
    %c0_9 = arith.constant 0 : index
    %c0_10 = arith.constant 0 : index
    %12 = vector.load %arg5[%c0_9, %c0_10] : memref<1x32xf32, #tpu.memory_space<vmem>>, vector<1x32xf32>
    %13 = vector.broadcast %12 : vector<1x32xf32> to vector<8x32xf32>
    %14 = arith.addf %11, %13 : vector<8x32xf32>
    %cst_11 = arith.constant 0.000000e+00 : f32
    %15 = vector.broadcast %cst_11 : f32 to vector<8x32xf32>
    %16 = arith.maximumf %14, %15 : vector<8x32xf32>
    %17 = arith.truncf %16 : vector<8x32xf32> to vector<8x32xbf16>
    %c0_12 = arith.constant 0 : index
    %c0_13 = arith.constant 0 : index
    %18 = vector.load %arg6[%c0_12, %c0_13] : memref<32x32xbf16, #tpu.memory_space<vmem>>, vector<32x32xbf16>
    %cst_14 = arith.constant dense<0.000000e+00> : vector<8x32xf32>
    %19 = tpu.matmul %17, %18, %cst_14 {dimension_numbers = #tpu.dot_dimension_numbers<[1], [0], [0], [1], [0, 0, 1, 1], [], []>} : vector<8x32xbf16>, vector<32x32xbf16>, vector<8x32xf32> -> vector<8x32xf32>
    %c0_15 = arith.constant 0 : index
    %c0_16 = arith.constant 0 : index
    %20 = vector.load %arg7[%c0_15, %c0_16] : memref<1x32xf32, #tpu.memory_space<vmem>>, vector<1x32xf32>
    %21 = vector.broadcast %20 : vector<1x32xf32> to vector<8x32xf32>
    %22 = arith.addf %19, %21 : vector<8x32xf32>
    %cst_17 = arith.constant 0.000000e+00 : f32
    %23 = vector.broadcast %cst_17 : f32 to vector<8x32xf32>
    %24 = arith.maximumf %22, %23 : vector<8x32xf32>
    %25 = arith.truncf %24 : vector<8x32xf32> to vector<8x32xbf16>
    %c0_18 = arith.constant 0 : index
    %c0_19 = arith.constant 0 : index
    %26 = vector.load %arg8[%c0_18, %c0_19] : memref<32x64xbf16, #tpu.memory_space<vmem>>, vector<32x64xbf16>
    %cst_20 = arith.constant dense<0.000000e+00> : vector<8x64xf32>
    %27 = tpu.matmul %25, %26, %cst_20 {dimension_numbers = #tpu.dot_dimension_numbers<[1], [0], [0], [1], [0, 0, 1, 1], [], []>} : vector<8x32xbf16>, vector<32x64xbf16>, vector<8x64xf32> -> vector<8x64xf32>
    %c0_21 = arith.constant 0 : index
    %c0_22 = arith.constant 0 : index
    %28 = vector.load %arg9[%c0_21, %c0_22] : memref<1x64xf32, #tpu.memory_space<vmem>>, vector<1x64xf32>
    %29 = vector.broadcast %28 : vector<1x64xf32> to vector<8x64xf32>
    %30 = arith.addf %27, %29 : vector<8x64xf32>
    %cst_23 = arith.constant 0.000000e+00 : f32
    %31 = vector.broadcast %cst_23 : f32 to vector<8x64xf32>
    %32 = arith.maximumf %30, %31 : vector<8x64xf32>
    %33 = arith.truncf %32 : vector<8x64xf32> to vector<8x64xbf16>
    %c0_24 = arith.constant 0 : index
    %c0_25 = arith.constant 0 : index
    %34 = vector.load %arg10[%c0_24, %c0_25] : memref<64x128xbf16, #tpu.memory_space<vmem>>, vector<64x128xbf16>
    %cst_26 = arith.constant dense<0.000000e+00> : vector<8x128xf32>
    %35 = tpu.matmul %33, %34, %cst_26 {dimension_numbers = #tpu.dot_dimension_numbers<[1], [0], [0], [1], [0, 0, 1, 1], [], []>} : vector<8x64xbf16>, vector<64x128xbf16>, vector<8x128xf32> -> vector<8x128xf32>
    %c0_27 = arith.constant 0 : index
    %c0_28 = arith.constant 0 : index
    %36 = vector.load %arg11[%c0_27, %c0_28] : memref<1x128xf32, #tpu.memory_space<vmem>>, vector<1x128xf32>
    %37 = vector.broadcast %36 : vector<1x128xf32> to vector<8x128xf32>
    %38 = arith.addf %35, %37 : vector<8x128xf32>
    %39 = arith.truncf %38 : vector<8x128xf32> to vector<8x128xbf16>
    %c0_29 = arith.constant 0 : index
    %c0_30 = arith.constant 0 : index
    %40 = vector.load %arg12[%c0_29, %c0_30] : memref<8x128xbf16, #tpu.memory_space<vmem>>, vector<8x128xbf16>
    tpu.vector_store %arg12[%c0_29, %c0_30], %39 {strides = array<i32>} : memref<8x128xbf16, #tpu.memory_space<vmem>>, vector<8x128xbf16>,
    return
  }
  func.func @transform_0(%arg0: i32) -> (i32, i32) {
    %c0_i32 = arith.constant 0 : i32
    %c0_i32_0 = arith.constant 0 : i32
    return %arg0, %c0_i32 : i32, i32
  }
  func.func @transform_1(%arg0: i32) -> (i32, i32) {
    %c0_i32 = arith.constant 0 : i32
    %c0_i32_0 = arith.constant 0 : i32
    %c0_i32_1 = arith.constant 0 : i32
    return %c0_i32, %c0_i32_0 : i32, i32
  }
  func.func @transform_2(%arg0: i32) -> (i32, i32) {
    %c0_i32 = arith.constant 0 : i32
    %c0_i32_0 = arith.constant 0 : i32
    %c0_i32_1 = arith.constant 0 : i32
    return %c0_i32, %c0_i32_0 : i32, i32
  }
  func.func @transform_3(%arg0: i32) -> (i32, i32) {
    %c0_i32 = arith.constant 0 : i32
    %c0_i32_0 = arith.constant 0 : i32
    %c0_i32_1 = arith.constant 0 : i32
    return %c0_i32, %c0_i32_0 : i32, i32
  }
  func.func @transform_4(%arg0: i32) -> (i32, i32) {
    %c0_i32 = arith.constant 0 : i32
    %c0_i32_0 = arith.constant 0 : i32
    %c0_i32_1 = arith.constant 0 : i32
    return %c0_i32, %c0_i32_0 : i32, i32
  }
  func.func @transform_5(%arg0: i32) -> (i32, i32) {
    %c0_i32 = arith.constant 0 : i32
    %c0_i32_0 = arith.constant 0 : i32
    %c0_i32_1 = arith.constant 0 : i32
    return %c0_i32, %c0_i32_0 : i32, i32
  }
  func.func @transform_6(%arg0: i32) -> (i32, i32) {
    %c0_i32 = arith.constant 0 : i32
    %c0_i32_0 = arith.constant 0 : i32
    %c0_i32_1 = arith.constant 0 : i32
    return %c0_i32, %c0_i32_0 : i32, i32
  }
  func.func @transform_7(%arg0: i32) -> (i32, i32) {
    %c0_i32 = arith.constant 0 : i32
    %c0_i32_0 = arith.constant 0 : i32
    %c0_i32_1 = arith.constant 0 : i32
    return %c0_i32, %c0_i32_0 : i32, i32
  }
  func.func @transform_8(%arg0: i32) -> (i32, i32) {
    %c0_i32 = arith.constant 0 : i32
    %c0_i32_0 = arith.constant 0 : i32
    %c0_i32_1 = arith.constant 0 : i32
    return %c0_i32, %c0_i32_0 : i32, i32
  }
  func.func @transform_9(%arg0: i32) -> (i32, i32) {
    %c0_i32 = arith.constant 0 : i32
    %c0_i32_0 = arith.constant 0 : i32
    %c0_i32_1 = arith.constant 0 : i32
    return %c0_i32, %c0_i32_0 : i32, i32
  }
  func.func @transform_10(%arg0: i32) -> (i32, i32) {
    %c0_i32 = arith.constant 0 : i32
    %c0_i32_0 = arith.constant 0 : i32
    %c0_i32_1 = arith.constant 0 : i32
    return %c0_i32, %c0_i32_0 : i32, i32
  }
  func.func @transform_11(%arg0: i32) -> (i32, i32) {
    %c0_i32 = arith.constant 0 : i32
    %c0_i32_0 = arith.constant 0 : i32
    return %arg0, %c0_i32 : i32, i32
  }
}

</mosaic_0001>

<llo_original>
// kernel: dueling_net.1
$region0: #{dueling_net.1}
  #allocation0 [shape = 'u32[]', space=smem, size = 0x4, offset = 0x4, fixed_abs, tag = 'smem constant byte address 0x4 - core index']
  #allocation1 [shape = 'u32[144,128]{1,0:T(1,128)}', space=vmem, size = 0x12000, scoped, tag = 'internal scratch']
  %s0 = inlined_call_operand.hbm [shape: f32[8,32], index: 0, kind: input, shape index: {}]
  %s1 = inlined_call_operand.vmem [shape: bf16[32,64], index: 1, kind: input, shape index: {}]
  %s2 = inlined_call_operand.vmem [shape: f32[1,64], index: 2, kind: input, shape index: {}]
  %s3 = inlined_call_operand.vmem [shape: bf16[64,32], index: 3, kind: input, shape index: {}]
  %s4 = inlined_call_operand.vmem [shape: f32[1,32], index: 4, kind: input, shape index: {}]
  %s5 = inlined_call_operand.vmem [shape: bf16[32,32], index: 5, kind: input, shape index: {}]
  %s6 = inlined_call_operand.vmem [shape: f32[1,32], index: 6, kind: input, shape index: {}]
  %s7 = inlined_call_operand.hbm [shape: bf16[32,64], index: 7, kind: input, shape index: {}]
  %s8 = inlined_call_operand.vmem [shape: f32[1,64], index: 8, kind: input, shape index: {}]
  %s9 = inlined_call_operand.vmem [shape: bf16[64,128], index: 9, kind: input, shape index: {}]
  %s10 = inlined_call_operand.vmem [shape: f32[1,128], index: 10, kind: input, shape index: {}]
  %s11 = inlined_call_operand.hbm [shape: bf16[8,128], index: 11, kind: output, shape index: {}]
  %s12 = sld [smem:[#allocation0]]
  $region62: #{dueling_net.1} parent=0
    _
  %s14 = ssub.s32 1, %s12
  %s15 = scalar_select 0, %s14, %s12
  $region1: #{dueling_net.1} parent=0
    #allocation2 [shape = 'u8[4096]{0}', space=vmem, size = 0x1000, scoped, tag = 'input window, operand 0, single buffered']
    #allocation3 [shape = 's32[1]{0}', space=sflag, size = 0x4, scoped, tag = 'scoped memory for dueling_net.1']
    #allocation4 [shape = 's32[1]{0}', space=sflag, size = 0x4, scoped, tag = 'scoped memory for dueling_net.1']
    #allocation5 [shape = 'u8[8192]{0}', space=vmem, size = 0x2000, scoped, tag = 'input window, operand 7, single buffered']
    #allocation6 [shape = 's32[1]{0}', space=sflag, size = 0x4, scoped, tag = 'scoped memory for dueling_net.1']
    #allocation7 [shape = 'u8[2048]{0}', space=vmem, size = 0x800, scoped, tag = 'output window, operand 0, single buffered']
    %16 = vsyncpa [#allocation3], 0
    %17 = vsyncpa [#allocation6], 0
    %18 = vsyncpa [#allocation4], 0
    // Predicated region
    $region2: #{dueling_net.1} parent=1 // pred_check
      _
    $region3: #{dueling_net.1} parent=1 // pred_check_branch
      %20 = sbr.rel (0) target = $region5
    $region4: #{dueling_net.1} parent=1 // pred_region
      %s22 = ssub.s32 128, 128
      %23 = vsyncadd [#allocation3], %s22
      %s25 = sshll.u32 [#allocation2], 4
      %s26 = int_to_ptr.vmem [resolvable:$true] %s25
      %28 = dma.hbm_to_vmem [thread:$0]  %s0, 128, %s26, [#allocation3]
    $region5: #{dueling_net.1} parent=1 // pred_fallthru
      _
    // Predicated region
    $region6: #{dueling_net.1} parent=1 // pred_check
      _
    $region7: #{dueling_net.1} parent=1 // pred_check_branch
      %30 = sbr.rel (0) target = $region9
    $region8: #{dueling_net.1} parent=1 // pred_region
      _
    $region9: #{dueling_net.1} parent=1 // pred_fallthru
      _
    // Predicated region
    $region10: #{dueling_net.1} parent=1 // pred_check
      _
    $region11: #{dueling_net.1} parent=1 // pred_check_branch
      %32 = sbr.rel (0) target = $region13
    $region12: #{dueling_net.1} parent=1 // pred_region
      _
    $region13: #{dueling_net.1} parent=1 // pred_fallthru
      _
    // Predicated region
    $region14: #{dueling_net.1} parent=1 // pred_check
      _
    $region15: #{dueling_net.1} parent=1 // pred_check_branch
      %34 = sbr.rel (0) target = $region17
    $region16: #{dueling_net.1} parent=1 // pred_region
      _
    $region17: #{dueling_net.1} parent=1 // pred_fallthru
      _
    // Predicated region
    $region18: #{dueling_net.1} parent=1 // pred_check
      _
    $region19: #{dueling_net.1} parent=1 // pred_check_branch
      %36 = sbr.rel (0) target = $region21
    $region20: #{dueling_net.1} parent=1 // pred_region
      _
    $region21: #{dueling_net.1} parent=1 // pred_fallthru
      _
    // Predicated region
    $region22: #{dueling_net.1} parent=1 // pred_check
      _
    $region23: #{dueling_net.1} parent=1 // pred_check_branch
      %38 = sbr.rel (0) target = $region25
    $region24: #{dueling_net.1} parent=1 // pred_region
      _
    $region25: #{dueling_net.1} parent=1 // pred_fallthru
      _
    // Predicated region
    $region26: #{dueling_net.1} parent=1 // pred_check
      _
    $region27: #{dueling_net.1} parent=1 // pred_check_branch
      %40 = sbr.rel (0) target = $region29
    $region28: #{dueling_net.1} parent=1 // pred_region
      _
    $region29: #{dueling_net.1} parent=1 // pred_fallthru
      _
    // Predicated region
    $region30: #{dueling_net.1} parent=1 // pred_check
      _
    $region31: #{dueling_net.1} parent=1 // pred_check_branch
      %42 = sbr.rel (0) target = $region33
    $region32: #{dueling_net.1} parent=1 // pred_region
      %s44 = ssub.s32 256, 256
      %45 = vsyncadd [#allocation6], %s44
      %s46 = sshll.u32 [#allocation5], 4
      %s47 = int_to_ptr.vmem [resolvable:$true] %s46
      %52 = dma.hbm_to_vmem [thread:$0]  %s7, 256, %s47, [#allocation6], 64, 64, 4
    $region33: #{dueling_net.1} parent=1 // pred_fallthru
      _
    // Predicated region
    $region34: #{dueling_net.1} parent=1 // pred_check
      _
    $region35: #{dueling_net.1} parent=1 // pred_check_branch
      %54 = sbr.rel (0) target = $region37
    $region36: #{dueling_net.1} parent=1 // pred_region
      _
    $region37: #{dueling_net.1} parent=1 // pred_fallthru
      _
    // Predicated region
    $region38: #{dueling_net.1} parent=1 // pred_check
      _
    $region39: #{dueling_net.1} parent=1 // pred_check_branch
      %56 = sbr.rel (0) target = $region41
    $region40: #{dueling_net.1} parent=1 // pred_region
      _
    $region41: #{dueling_net.1} parent=1 // pred_fallthru
      _
    // Predicated region
    $region42: #{dueling_net.1} parent=1 // pred_check
      _
    $region43: #{dueling_net.1} parent=1 // pred_check_branch
      %58 = sbr.rel (0) target = $region45
    $region44: #{dueling_net.1} parent=1 // pred_region
      _
    $region45: #{dueling_net.1} parent=1 // pred_fallthru
      _
    // Predicated region
    $region46: #{dueling_net.1} parent=1 // pred_check
      _
    $region47: #{dueling_net.1} parent=1 // pred_check_branch
      %60 = sbr.rel (0) target = $region49
    $region48: #{dueling_net.1} parent=1 // pred_region
      %61 = dma.done [#allocation3], 128
    $region49: #{dueling_net.1} parent=1 // pred_fallthru
      _
    // Predicated region
    $region50: #{dueling_net.1} parent=1 // pred_check
      _
    $region51: #{dueling_net.1} parent=1 // pred_check_branch
      %63 = sbr.rel (0) target = $region53
    $region52: #{dueling_net.1} parent=1 // pred_region
      %64 = dma.done [#allocation6], 256
    $region53: #{dueling_net.1} parent=1 // pred_fallthru
      _
    %v66 = vld [vmem:[#allocation2] sm:$0xff]
    %v67 = vpack.c.bf16 %v66, %v66
    %v68 = vld [vmem:[%s1] sm:$0xf]
    %v69 = vld [vmem:[%s1 + $0x4] sm:$0xf]
    %v70 = vld [vmem:[%s1 + $0x8] sm:$0xf]
    %v71 = vld [vmem:[%s1 + $0xc] sm:$0xf]
    %v72 = vld [vmem:[%s2] sm:$0x1]
    %v74 = vlaneseq
    %v75 = vshrl.u32 %v74, 7
    %v76 = vsub.s32 0, %v75
    %v77 = vrot.slane %v72, %v76
    %v83 = vunpack.c.l.b16 %v68
    %v84 = vunpack.c.l.b16 %v69
    %v85 = vunpack.c.l.b16 %v70
    %v86 = vunpack.c.l.b16 %v71
    %v87 = vpack.c.b16 %v84, %v83
    %v88 = vpack.c.b16 %v86, %v85
    %vm91 = vcmask 261120
    %v93 = vsel %vm91, %v67, 0
    %95 = vmatprep.subr.bf16.mxu0 0
    %96 = vmatpush1.bf16.msra.mxu0 %v87
    %97 = vmatprep.subr.bf16.mxu0 0
    %98 = vmatpush1.bf16.msra.mxu0 %v88
    %99 = vmatprep.subr.bf16.mxu0 0
    %100 = vmatpush1.bf16.msra.mxu0 0
    %101 = vmatprep.subr.bf16.mxu0 0
    %102 = vmatpush1.bf16.msra.mxu0 0
    %103 = vmatprep.subr.bf16.mxu0 0
    %104 = vmatpush1.bf16.msra.mxu0 0
    %105 = vmatprep.subr.bf16.mxu0 0
    %106 = vmatpush1.bf16.msra.mxu0 0
    %107 = vmatprep.subr.bf16.mxu0 0
    %108 = vmatpush1.bf16.msra.mxu0 0
    %109 = vmatprep.subr.bf16.mxu0 0
    %110 = vmatpush1.bf16.msra.mxu0 0
    %111 = vmatprep.subr.bf16.mxu0 0
    %112 = vmatpush1.bf16.msra.mxu0 0
    %113 = vmatprep.subr.bf16.mxu0 0
    %114 = vmatpush1.bf16.msra.mxu0 0
    %115 = vmatprep.subr.bf16.mxu0 0
    %116 = vmatpush1.bf16.msra.mxu0 0
    %117 = vmatprep.subr.bf16.mxu0 0
    %118 = vmatpush1.bf16.msra.mxu0 0
    %119 = vmatprep.subr.bf16.mxu0 0
    %120 = vmatpush1.bf16.msra.mxu0 0
    %121 = vmatprep.subr.bf16.mxu0 0
    %122 = vmatpush1.bf16.msra.mxu0 0
    %123 = vmatprep.subr.bf16.mxu0 0
    %124 = vmatpush1.bf16.msra.mxu0 0
    %125 = vmatprep.subr.bf16.mxu0 0
    %126 = vmatpush1.bf16.msra.mxu0 0
    %127 = vmatprep.mubr.bf16.mxu0 0
    %128 = vmatmul.mubr.bf16.gmra.mrb[0].mxu0 %v93
    %v129 = vpop.f32.mrb[0].mxu0
    %v130 = vadd.f32 %v77, %v129
    %v131 = vpop.f32.mrb[0].mxu0
    %v132 = vpop.f32.mrb[0].mxu0
    %v133 = vpop.f32.mrb[0].mxu0
    %134 = vdwg.mxu0
    %v135 = vmax.f32 %v130, 0.0
    %v136 = vpack.c.bf16 %v135, %v135
    %v137 = vld [vmem:[%s3] sm:$0xf]
    %v138 = vld [vmem:[%s3 + $0x4] sm:$0xf]
    %v139 = vld [vmem:[%s3 + $0x8] sm:$0xf]
    %v140 = vld [vmem:[%s3 + $0xc] sm:$0xf]
    %v141 = vld [vmem:[%s3 + $0x10] sm:$0xf]
    %v142 = vld [vmem:[%s3 + $0x14] sm:$0xf]
    %v143 = vld [vmem:[%s3 + $0x18] sm:$0xf]
    %v144 = vld [vmem:[%s3 + $0x1c] sm:$0xf]
    %v145 = vld [vmem:[%s4] sm:$0x1]
    %v147 = vlaneseq
    %v148 = vshrl.u32 %v147, 7
    %v149 = vsub.s32 0, %v148
    %v150 = vrot.slane %v145, %v149
    %v160 = vunpack.c.l.b16 %v137
    %v161 = vunpack.c.l.b16 %v138
    %v162 = vunpack.c.l.b16 %v139
    %v163 = vunpack.c.l.b16 %v140
    %v164 = vunpack.c.l.b16 %v141
    %v165 = vunpack.c.l.b16 %v142
    %v166 = vunpack.c.l.b16 %v143
    %v167 = vunpack.c.l.b16 %v144
    %v168 = vpack.c.b16 %v161, %v160
    %v169 = vpack.c.b16 %v163, %v162
    %v170 = vpack.c.b16 %v165, %v164
    %v171 = vpack.c.b16 %v167, %v166
    %vm176 = vcmask 523264
    %v178 = vsel %vm176, %v136, 0
    %180 = vmatprep.subr.bf16.mxu0 0
    %181 = vmatpush1.bf16.msra.mxu0 %v168
    %182 = vmatprep.subr.bf16.mxu0 0
    %183 = vmatpush1.bf16.msra.mxu0 %v169
    %184 = vmatprep.subr.bf16.mxu0 0
    %185 = vmatpush1.bf16.msra.mxu0 %v170
    %186 = vmatprep.subr.bf16.mxu0 0
    %187 = vmatpush1.bf16.msra.mxu0 %v171
    %188 = vmatprep.subr.bf16.mxu0 0
    %189 = vmatpush1.bf16.msra.mxu0 0
    %190 = vmatprep.subr.bf16.mxu0 0
    %191 = vmatpush1.bf16.msra.mxu0 0
    %192 = vmatprep.subr.bf16.mxu0 0
    %193 = vmatpush1.bf16.msra.mxu0 0
    %194 = vmatprep.subr.bf16.mxu0 0
    %195 = vmatpush1.bf16.msra.mxu0 0
    %196 = vmatprep.subr.bf16.mxu0 0
    %197 = vmatpush1.bf16.msra.mxu0 0
    %198 = vmatprep.subr.bf16.mxu0 0
    %199 = vmatpush1.bf16.msra.mxu0 0
    %200 = vmatprep.subr.bf16.mxu0 0
    %201 = vmatpush1.bf16.msra.mxu0 0
    %202 = vmatprep.subr.bf16.mxu0 0
    %203 = vmatpush1.bf16.msra.mxu0 0
    %204 = vmatprep.subr.bf16.mxu0 0
    %205 = vmatpush1.bf16.msra.mxu0 0
    %206 = vmatprep.subr.bf16.mxu0 0
    %207 = vmatpush1.bf16.msra.mxu0 0
    %208 = vmatprep.subr.bf16.mxu0 0
    %209 = vmatpush1.bf16.msra.mxu0 0
    %210 = vmatprep.subr.bf16.mxu0 0
    %211 = vmatpush1.bf16.msra.mxu0 0
    %212 = vmatprep.mubr.bf16.mxu0 0
    %213 = vmatmul.mubr.bf16.gmra.mrb[0].mxu0 %v178
    %v214 = vpop.f32.mrb[0].mxu0
    %v215 = vadd.f32 %v150, %v214
    %v216 = vpop.f32.mrb[0].mxu0
    %v217 = vpop.f32.mrb[0].mxu0
    %v218 = vpop.f32.mrb[0].mxu0
    %219 = vdwg.mxu0
    %v220 = vmax.f32 %v215, 0.0
    %v221 = vpack.c.bf16 %v220, %v220
    %v222 = vld [vmem:[%s5] sm:$0xf]
    %v223 = vld [vmem:[%s5 + $0x4] sm:$0xf]
    %v224 = vld [vmem:[%s5 + $0x8] sm:$0xf]
    %v225 = vld [vmem:[%s5 + $0xc] sm:$0xf]
    %v226 = vld [vmem:[%s6] sm:$0x1]
    %v228 = vlaneseq
    %v229 = vshrl.u32 %v228, 7
    %v230 = vsub.s32 0, %v229
    %v231 = vrot.slane %v226, %v230
    %v237 = vunpack.c.l.b16 %v222
    %v238 = vunpack.c.l.b16 %v223
    %v239 = vunpack.c.l.b16 %v224
    %v240 = vunpack.c.l.b16 %v225
    %v241 = vpack.c.b16 %v238, %v237
    %v242 = vpack.c.b16 %v240, %v239
    %v246 = vsel %vm91, %v221, 0
    %248 = vmatprep.subr.bf16.mxu0 0
    %249 = vmatpush1.bf16.msra.mxu0 %v241
    %250 = vmatprep.subr.bf16.mxu0 0
    %251 = vmatpush1.bf16.msra.mxu0 %v242
    %252 = vmatprep.subr.bf16.mxu0 0
    %253 = vmatpush1.bf16.msra.mxu0 0
    %254 = vmatprep.subr.bf16.mxu0 0
    %255 = vmatpush1.bf16.msra.mxu0 0
    %256 = vmatprep.subr.bf16.mxu0 0
    %257 = vmatpush1.bf16.msra.mxu0 0
    %258 = vmatprep.subr.bf16.mxu0 0
    %259 = vmatpush1.bf16.msra.mxu0 0
    %260 = vmatprep.subr.bf16.mxu0 0
    %261 = vmatpush1.bf16.msra.mxu0 0
    %262 = vmatprep.subr.bf16.mxu0 0
    %263 = vmatpush1.bf16.msra.mxu0 0
    %264 = vmatprep.subr.bf16.mxu0 0
    %265 = vmatpush1.bf16.msra.mxu0 0
    %266 = vmatprep.subr.bf16.mxu0 0
    %267 = vmatpush1.bf16.msra.mxu0 0
    %268 = vmatprep.subr.bf16.mxu0 0
    %269 = vmatpush1.bf16.msra.mxu0 0
    %270 = vmatprep.subr.bf16.mxu0 0
    %271 = vmatpush1.bf16.msra.mxu0 0
    %272 = vmatprep.subr.bf16.mxu0 0
    %273 = vmatpush1.bf16.msra.mxu0 0
    %274 = vmatprep.subr.bf16.mxu0 0
    %275 = vmatpush1.bf16.msra.mxu0 0
    %276 = vmatprep.subr.bf16.mxu0 0
    %277 = vmatpush1.bf16.msra.mxu0 0
    %278 = vmatprep.subr.bf16.mxu0 0
    %279 = vmatpush1.bf16.msra.mxu0 0
    %280 = vmatprep.mubr.bf16.mxu0 0
    %281 = vmatmul.mubr.bf16.gmra.mrb[0].mxu0 %v246
    %v282 = vpop.f32.mrb[0].mxu0
    %v283 = vadd.f32 %v231, %v282
    %v284 = vpop.f32.mrb[0].mxu0
    %v285 = vpop.f32.mrb[0].mxu0
    %v286 = vpop.f32.mrb[0].mxu0
    %287 = vdwg.mxu0
    %v288 = vmax.f32 %v283, 0.0
    %v289 = vpack.c.bf16 %v288, %v288
    %v290 = vld [vmem:[#allocation5] sm:$0xf]
    %v291 = vld [vmem:[#allocation5 + $0x4] sm:$0xf]
    %v292 = vld [vmem:[#allocation5 + $0x8] sm:$0xf]
    %v293 = vld [vmem:[#allocation5 + $0xc] sm:$0xf]
    %v294 = vld [vmem:[%s8] sm:$0x1]
    %v296 = vlaneseq
    %v297 = vshrl.u32 %v296, 7
    %v298 = vsub.s32 0, %v297
    %v299 = vrot.slane %v294, %v298
    %v305 = vunpack.c.l.b16 %v290
    %v306 = vunpack.c.l.b16 %v291
    %v307 = vunpack.c.l.b16 %v292
    %v308 = vunpack.c.l.b16 %v293
    %v309 = vpack.c.b16 %v306, %v305
    %v310 = vpack.c.b16 %v308, %v307
    %v314 = vsel %vm91, %v289, 0
    %316 = vmatprep.subr.bf16.mxu0 0
    %317 = vmatpush1.bf16.msra.mxu0 %v309
    %318 = vmatprep.subr.bf16.mxu0 0
    %319 = vmatpush1.bf16.msra.mxu0 %v310
    %320 = vmatprep.subr.bf16.mxu0 0
    %321 = vmatpush1.bf16.msra.mxu0 0
    %322 = vmatprep.subr.bf16.mxu0 0
    %323 = vmatpush1.bf16.msra.mxu0 0
    %324 = vmatprep.subr.bf16.mxu0 0
    %325 = vmatpush1.bf16.msra.mxu0 0
    %326 = vmatprep.subr.bf16.mxu0 0
    %327 = vmatpush1.bf16.msra.mxu0 0
    %328 = vmatprep.subr.bf16.mxu0 0
    %329 = vmatpush1.bf16.msra.mxu0 0
    %330 = vmatprep.subr.bf16.mxu0 0
    %331 = vmatpush1.bf16.msra.mxu0 0
    %332 = vmatprep.subr.bf16.mxu0 0
    %333 = vmatpush1.bf16.msra.mxu0 0
    %334 = vmatprep.subr.bf16.mxu0 0
    %335 = vmatpush1.bf16.msra.mxu0 0
    %336 = vmatprep.subr.bf16.mxu0 0
    %337 = vmatpush1.bf16.msra.mxu0 0
    %338 = vmatprep.subr.bf16.mxu0 0
    %339 = vmatpush1.bf16.msra.mxu0 0
    %340 = vmatprep.subr.bf16.mxu0 0
    %341 = vmatpush1.bf16.msra.mxu0 0
    %342 = vmatprep.subr.bf16.mxu0 0
    %343 = vmatpush1.bf16.msra.mxu0 0
    %344 = vmatprep.subr.bf16.mxu0 0
    %345 = vmatpush1.bf16.msra.mxu0 0
    %346 = vmatprep.subr.bf16.mxu0 0
    %347 = vmatpush1.bf16.msra.mxu0 0
    %348 = vmatprep.mubr.bf16.mxu0 0
    %349 = vmatmul.mubr.bf16.gmra.mrb[0].mxu0 %v314
    %v350 = vpop.f32.mrb[0].mxu0
    %v351 = vadd.f32 %v299, %v350
    %v352 = vpop.f32.mrb[0].mxu0
    %v353 = vpop.f32.mrb[0].mxu0
    %v354 = vpop.f32.mrb[0].mxu0
    %355 = vdwg.mxu0
    %v356 = vmax.f32 %v351, 0.0
    %v357 = vpack.c.bf16 %v356, %v356
    %v358 = vld [vmem:[%s9] sm:$0xf]
    %v359 = vld [vmem:[%s9 + $0x4] sm:$0xf]
    %v360 = vld [vmem:[%s9 + $0x8] sm:$0xf]
    %v361 = vld [vmem:[%s9 + $0xc] sm:$0xf]
    %v362 = vld [vmem:[%s9 + $0x10] sm:$0xf]
    %v363 = vld [vmem:[%s9 + $0x14] sm:$0xf]
    %v364 = vld [vmem:[%s9 + $0x18] sm:$0xf]
    %v365 = vld [vmem:[%s9 + $0x1c] sm:$0xf]
    %v366 = vld [vmem:[%s10] sm:$0x1]
    %v368 = vlaneseq
    %v369 = vshrl.u32 %v368, 7
    %v370 = vsub.s32 0, %v369
    %v371 = vrot.slane %v366, %v370
    %v381 = vunpack.c.l.b16 %v358
    %v382 = vunpack.c.l.b16 %v359
    %v383 = vunpack.c.l.b16 %v360
    %v384 = vunpack.c.l.b16 %v361
    %v385 = vunpack.c.l.b16 %v362
    %v386 = vunpack.c.l.b16 %v363
    %v387 = vunpack.c.l.b16 %v364
    %v388 = vunpack.c.l.b16 %v365
    %v389 = vpack.c.b16 %v382, %v381
    %v390 = vpack.c.b16 %v384, %v383
    %v391 = vpack.c.b16 %v386, %v385
    %v392 = vpack.c.b16 %v388, %v387
    %v398 = vsel %vm176, %v357, 0
    %400 = vmatprep.subr.bf16.mxu0 0
    %401 = vmatpush1.bf16.msra.mxu0 %v389
    %402 = vmatprep.subr.bf16.mxu0 0
    %403 = vmatpush1.bf16.msra.mxu0 %v390
    %404 = vmatprep.subr.bf16.mxu0 0
    %405 = vmatpush1.bf16.msra.mxu0 %v391
    %406 = vmatprep.subr.bf16.mxu0 0
    %407 = vmatpush1.bf16.msra.mxu0 %v392
    %408 = vmatprep.subr.bf16.mxu0 0
    %409 = vmatpush1.bf16.msra.mxu0 0
    %410 = vmatprep.subr.bf16.mxu0 0
    %411 = vmatpush1.bf16.msra.mxu0 0
    %412 = vmatprep.subr.bf16.mxu0 0
    %413 = vmatpush1.bf16.msra.mxu0 0
    %414 = vmatprep.subr.bf16.mxu0 0
    %415 = vmatpush1.bf16.msra.mxu0 0
    %416 = vmatprep.subr.bf16.mxu0 0
    %417 = vmatpush1.bf16.msra.mxu0 0
    %418 = vmatprep.subr.bf16.mxu0 0
    %419 = vmatpush1.bf16.msra.mxu0 0
    %420 = vmatprep.subr.bf16.mxu0 0
    %421 = vmatpush1.bf16.msra.mxu0 0
    %422 = vmatprep.subr.bf16.mxu0 0
    %423 = vmatpush1.bf16.msra.mxu0 0
    %424 = vmatprep.subr.bf16.mxu0 0
    %425 = vmatpush1.bf16.msra.mxu0 0
    %426 = vmatprep.subr.bf16.mxu0 0
    %427 = vmatpush1.bf16.msra.mxu0 0
    %428 = vmatprep.subr.bf16.mxu0 0
    %429 = vmatpush1.bf16.msra.mxu0 0
    %430 = vmatprep.subr.bf16.mxu0 0
    %431 = vmatpush1.bf16.msra.mxu0 0
    %432 = vmatprep.mubr.bf16.mxu0 0
    %433 = vmatmul.mubr.bf16.gmra.mrb[0].mxu0 %v398
    %v434 = vpop.f32.mrb[0].mxu0
    %v435 = vadd.f32 %v371, %v434
    %v436 = vpop.f32.mrb[0].mxu0
    %v437 = vpop.f32.mrb[0].mxu0
    %v438 = vpop.f32.mrb[0].mxu0
    %439 = vdwg.mxu0
    %v440 = vpack.c.bf16 %v435, %v435
    %441 = vst [vmem:[#allocation7] sm:$0xf] %v440
    // Predicated region
    $region54: #{dueling_net.1} parent=1 // pred_check
      _
    $region55: #{dueling_net.1} parent=1 // pred_check_branch
      %443 = sbr.rel (0) target = $region57
    $region56: #{dueling_net.1} parent=1 // pred_region
      %s445 = ssub.s32 64, 64
      %446 = vsyncadd [#allocation4], %s445
      %s448 = sshll.u32 [#allocation7], 4
      %s449 = int_to_ptr.vmem [resolvable:$true] %s448
      %451 = dma.vmem_to_hbm [thread:$0]  %s449, 64, %s11, [#allocation4]
    $region57: #{dueling_net.1} parent=1 // pred_fallthru
      _
    // Predicated region
    $region58: #{dueling_net.1} parent=1 // pred_check
      _
    $region59: #{dueling_net.1} parent=1 // pred_check_branch
      %453 = sbr.rel (0) target = $region61
    $region60: #{dueling_net.1} parent=1 // pred_region
      %454 = dma.done [#allocation4], 64
    $region61: #{dueling_net.1} parent=1 // pred_fallthru
      _
    %455 = vsyncpa [#allocation3], 1
    %456 = vsyncpa [#allocation6], 1
    %457 = vsyncpa [#allocation4], 1

</llo_original>
